<compile_context>
chip_gen: v7x
topology: tpu7x:2x2x1
jax: 0.10.0
libtpu: 0.0.40
codegen_flags: <defaults>
</compile_context>

<pallas_src>
import jax
import jax.numpy as jnp
from jax.experimental import pallas as pl
from jax.experimental.pallas import tpu as pltpu

# Config (small, consistent with the module's cfg dict)
STATE_DIM = 32
DENSE_DIM = 64
SPARSE_DIM = 32
HIDDEN = (64, 64)                              # cfg['hidden_dims']
IN_DIM = STATE_DIM + DENSE_DIM + SPARSE_DIM    # 128
CAT_DIM = 3 * HIDDEN[-1]                       # 192 (concat of the three branches)
PACK_DIM = 256                                 # fused hidden width, padded to 2*128 lanes
OUT_DIM = 2 * HIDDEN[-1]                       # 128 (hidden_states_shape)


def encoder_kernel(x_ref, w0_ref, b0_ref, w1_ref, b1_ref, wo_ref, bo_ref, out_ref):
    # Layer 0 (block-diagonal pack of the three branch first layers).
    # x arrives already cast (on the host) to the weight dtype; MXU accumulates f32.
    h0 = jnp.dot(x_ref[...], w0_ref[...], preferred_element_type=jnp.float32)
    h0 = jnp.maximum(h0 + b0_ref[...], 0.0)

    # Layer 1 (block-diagonal pack of the three branch second layers)
    h1 = jnp.dot(h0.astype(w1_ref.dtype), w1_ref[...],
                 preferred_element_type=jnp.float32)
    h1 = jnp.maximum(h1 + b1_ref[...], 0.0)

    # RLProjection on the (implicitly concatenated, zero-padded) branch outputs
    out = jnp.dot(h1.astype(wo_ref.dtype), wo_ref[...],
                  preferred_element_type=jnp.float32)
    out_ref[...] = jnp.maximum(out + bo_ref[...], 0.0).astype(out_ref.dtype)


def _default_tile(batch, *, num_cores=2, min_steps_per_core=4, min_tb=128, max_tb=1024):
    """Pick a batch tile: big enough to amortise per-step overhead (~0.35us), small
    enough that the grid has >= min_steps_per_core steps per TensorCore so the
    input/output DMA pipeline ramps, and prefer an even step count for v7x's 2 TCs."""
    tb = max_tb
    while tb > min_tb and pl.cdiv(batch, tb) < num_cores * min_steps_per_core:
        tb //= 2
    if tb > min_tb and pl.cdiv(batch, tb) % 2 == 1:
        tb //= 2
    return tb


def mlp_multi_height_encoder(x, packed_params, *, tb=None, out_dtype=jnp.float32,
                             vmem_limit_bytes=32 * 1024 * 1024):
    """x: (B, IN_DIM); packed_params from pack_params(). Returns (B, OUT_DIM)."""
    B, D = x.shape
    assert D == IN_DIM
    w0, b0, w1, b1, wo, bo = packed_params

    # Cast x on the host to the (possibly bf16) weight dtype: one fused XLA cast,
    # halves streamed input bytes and avoids an in-kernel VPU pass per tile.
    if x.dtype != w0.dtype:
        x = x.astype(w0.dtype)

    if tb is None:
        tb = _default_tile(B)
    n_tiles = pl.cdiv(B, tb)   # trailing partial block handled by masked edge DMAs

    in_specs = [
        pl.BlockSpec((tb, D), lambda i: (i, 0)),
        # Parameter refs: full-array blocks with constant index maps (fetched once,
        # resident in VMEM across all grid steps).
        pl.BlockSpec(w0.shape, lambda i: (0, 0)),
        pl.BlockSpec(b0.shape, lambda i: (0, 0)),
        pl.BlockSpec(w1.shape, lambda i: (0, 0)),
        pl.BlockSpec(b1.shape, lambda i: (0, 0)),
        pl.BlockSpec(wo.shape, lambda i: (0, 0)),
        pl.BlockSpec(bo.shape, lambda i: (0, 0)),
    ]
    out_spec = pl.BlockSpec((tb, OUT_DIM), lambda i: (i, 0))

    flops = 2 * B * (IN_DIM * PACK_DIM + PACK_DIM * PACK_DIM + PACK_DIM * OUT_DIM)
    bytes_accessed = (
        x.size * x.dtype.itemsize
        + sum(int(a.size) * a.dtype.itemsize for a in (w0, b0, w1, b1, wo, bo))
        + B * OUT_DIM * jnp.dtype(out_dtype).itemsize)

    out = pl.pallas_call(
        encoder_kernel,
        out_shape=jax.ShapeDtypeStruct((B, OUT_DIM), out_dtype),
        grid_spec=pltpu.PrefetchScalarGridSpec(
            num_scalar_prefetch=0,
            grid=(n_tiles,),
            in_specs=in_specs,
            out_specs=out_spec,
        ),
        compiler_params=pltpu.CompilerParams(
            dimension_semantics=("parallel",),      # shards batch tiles across v7x TCs
            vmem_limit_bytes=vmem_limit_bytes,      # v5e default scoped VMEM is only 16 MiB
        ),
        cost_estimate=pl.CostEstimate(flops=flops, transcendentals=0,
                                      bytes_accessed=int(bytes_accessed)),
    )(x, w0, b0, w1, b1, wo, bo)
    return out


def init_params(key):
    """Deterministic PyTorch-default-style Linear init (uniform +-1/sqrt(fan_in)).
    Weights stored (in, out) so y = x @ W + b (== x @ W_torch.T + b)."""
    def linear(k, fan_in, fan_out):
        kw, kb = jax.random.split(k)
        bound = 1.0 / float(fan_in) ** 0.5
        w = jax.random.uniform(kw, (fan_in, fan_out), jnp.float32, -bound, bound)
        b = jax.random.uniform(kb, (1, fan_out), jnp.float32, -bound, bound)
        return w, b

    keys = jax.random.split(key, 7)
    pw0, pb0 = linear(keys[0], STATE_DIM, HIDDEN[0])
    pw1, pb1 = linear(keys[1], HIDDEN[0], HIDDEN[1])
    dw0, db0 = linear(keys[2], DENSE_DIM, HIDDEN[0])
    dw1, db1 = linear(keys[3], HIDDEN[0], HIDDEN[1])
    sw0, sb0 = linear(keys[4], SPARSE_DIM, HIDDEN[0])
    sw1, sb1 = linear(keys[5], HIDDEN[0], HIDDEN[1])
    ow, ob = linear(keys[6], CAT_DIM, OUT_DIM)
    return (pw0, pb0, pw1, pb1,
            dw0, db0, dw1, db1,
            sw0, sb0, sw1, sb1,
            ow, ob)


def pack_params(params, weight_dtype=jnp.bfloat16):
    """Pack the 14 per-branch arrays into 3 block-diagonal weights (+3 f32 biases),
    zero-padded so the fused hidden width is 256 (lane-dense). Zero pad rows/cols and
    zero bias keep the math identical (ReLU(0) = 0 contributes nothing downstream).
    Default weight_dtype=bf16: MXU-native on v5e/v6e/v7x and halves weight/x bytes;
    matmuls still accumulate in f32, bias add + ReLU stay f32."""
    (pw0, pb0, pw1, pb1, dw0, db0, dw1, db1,
     sw0, sb0, sw1, sb1, ow, ob) = params
    H = HIDDEN[0]

    w0 = jnp.zeros((IN_DIM, PACK_DIM), jnp.float32)
    w0 = w0.at[0:STATE_DIM, 0:H].set(pw0)
    w0 = w0.at[STATE_DIM:STATE_DIM + DENSE_DIM, H:2 * H].set(dw0)
    w0 = w0.at[STATE_DIM + DENSE_DIM:IN_DIM, 2 * H:3 * H].set(sw0)
    b0 = jnp.zeros((1, PACK_DIM), jnp.float32)
    b0 = b0.at[:, 0:H].set(pb0).at[:, H:2 * H].set(db0).at[:, 2 * H:3 * H].set(sb0)

    w1 = jnp.zeros((PACK_DIM, PACK_DIM), jnp.float32)
    w1 = w1.at[0:H, 0:H].set(pw1)
    w1 = w1.at[H:2 * H, H:2 * H].set(dw1)
    w1 = w1.at[2 * H:3 * H, 2 * H:3 * H].set(sw1)
    b1 = jnp.zeros((1, PACK_DIM), jnp.float32)
    b1 = b1.at[:, 0:H].set(pb1).at[:, H:2 * H].set(db1).at[:, 2 * H:3 * H].set(sb1)

    wo = jnp.zeros((PACK_DIM, OUT_DIM), jnp.float32)
    wo = wo.at[0:CAT_DIM, :].set(ow)     # rows ordered [state | dense | sparse | pad]
    bo = ob

    return (w0.astype(weight_dtype), b0,
            w1.astype(weight_dtype), b1,
            wo.astype(weight_dtype), bo)


def reference_forward(x, params):
    """Pure-JAX reference with the original (unpacked, per-branch) semantics."""
    (pw0, pb0, pw1, pb1, dw0, db0, dw1, db1,
     sw0, sb0, sw1, sb1, ow, ob) = params
    relu = lambda v: jnp.maximum(v, 0.0)
    s = x[:, :STATE_DIM]
    d = x[:, STATE_DIM:STATE_DIM + DENSE_DIM]
    sp = x[:, STATE_DIM + DENSE_DIM:]
    so = relu(relu(s @ pw0 + pb0) @ pw1 + pb1)
    do = relu(relu(d @ dw0 + db0) @ dw1 + db1)
    spo = relu(relu(sp @ sw0 + sb0) @ sw1 + sb1)
    return relu(jnp.concatenate([so, do, spo], axis=-1) @ ow + ob)


if __name__ == "__main__":
    key = jax.random.PRNGKey(0)
    kx, kp = jax.random.split(key)

    B = 512                       # adaptive tile -> tb=128, 4 grid steps (2 per v7x TC)
    x = jax.random.normal(kx, (B, IN_DIM), jnp.float32)
    params = init_params(kp)
    ref = reference_forward(x, params)

    # 1) f32 weight path: exact-math check (tight tolerance).
    packed_f32 = pack_params(params, weight_dtype=jnp.float32)
    out_f32 = jax.block_until_ready(mlp_multi_height_encoder(x, packed_f32))
    assert out_f32.shape == (B, OUT_DIM)
    assert jnp.allclose(out_f32, ref, atol=1e-4, rtol=1e-4)

    # 2) bf16 fast path (deployment default), bf16 output: loose tolerance.
    packed_bf16 = pack_params(params)     # bf16 weights
    out_bf16 = jax.block_until_ready(
        mlp_multi_height_encoder(x, packed_bf16, out_dtype=jnp.bfloat16))
    assert out_bf16.shape == (B, OUT_DIM) and out_bf16.dtype == jnp.bfloat16
    assert jnp.allclose(out_bf16.astype(jnp.float32), ref, atol=5e-2, rtol=5e-2)

    # 3) Ragged batch (no host pad / slice): trailing partial block path.
    out_rag = jax.block_until_ready(mlp_multi_height_encoder(x[:300], packed_bf16))
    assert out_rag.shape == (300, OUT_DIM)
    assert jnp.allclose(out_rag.astype(jnp.float32), ref[:300], atol=5e-2, rtol=5e-2)

    print("KERNEL_OK")
</pallas_src>

<mosaic_0001>
module attributes {stable_mosaic.version = 11 : i64} {
  func.func @encoder_kernel(%arg0: i32, %arg1: memref<128x128xf32, #tpu.memory_space<vmem>>, %arg2: memref<128x256xf32, #tpu.memory_space<vmem>>, %arg3: memref<1x256xf32, #tpu.memory_space<vmem>>, %arg4: memref<256x256xf32, #tpu.memory_space<vmem>>, %arg5: memref<1x256xf32, #tpu.memory_space<vmem>>, %arg6: memref<256x128xf32, #tpu.memory_space<vmem>>, %arg7: memref<1x128xf32, #tpu.memory_space<vmem>>, %arg8: memref<128x128xf32, #tpu.memory_space<vmem>>) attributes {dimension_semantics = [#tpu.dimension_semantics<parallel>], iteration_bounds = array<i64: 4>, scalar_prefetch = 0 : i64, scratch_operands = 0 : i64, tpu.core_type = #tpu.core_type<tc>, window_params = [{transform_indices = @transform_0, window_bounds = array<i64: 128, 128>}, {pipeline_mode = #tpu.pipeline_mode<synchronous>, transform_indices = @transform_1, window_bounds = array<i64: 128, 256>}, {pipeline_mode = #tpu.pipeline_mode<synchronous>, transform_indices = @transform_2, window_bounds = array<i64: 1, 256>}, {pipeline_mode = #tpu.pipeline_mode<synchronous>, transform_indices = @transform_3, window_bounds = array<i64: 256, 256>}, {pipeline_mode = #tpu.pipeline_mode<synchronous>, transform_indices = @transform_4, window_bounds = array<i64: 1, 256>}, {pipeline_mode = #tpu.pipeline_mode<synchronous>, transform_indices = @transform_5, window_bounds = array<i64: 256, 128>}, {pipeline_mode = #tpu.pipeline_mode<synchronous>, transform_indices = @transform_6, window_bounds = array<i64: 1, 128>}, {transform_indices = @transform_7, window_bounds = array<i64: 128, 128>}]} {
    %c0 = arith.constant 0 : index
    %c0_0 = arith.constant 0 : index
    %0 = vector.load %arg1[%c0, %c0_0] : memref<128x128xf32, #tpu.memory_space<vmem>>, vector<128x128xf32>
    %c0_1 = arith.constant 0 : index
    %c0_2 = arith.constant 0 : index
    %1 = vector.load %arg2[%c0_1, %c0_2] : memref<128x256xf32, #tpu.memory_space<vmem>>, vector<128x256xf32>
    %cst = arith.constant dense<0.000000e+00> : vector<128x256xf32>
    %2 = tpu.matmul %0, %1, %cst {dimension_numbers = #tpu.dot_dimension_numbers<[1], [0], [0], [1], [0, 0, 1, 1], [], []>} : vector<128x128xf32>, vector<128x256xf32>, vector<128x256xf32> -> vector<128x256xf32>
    %c0_3 = arith.constant 0 : index
    %c0_4 = arith.constant 0 : index
    %3 = vector.load %arg3[%c0_3, %c0_4] : memref<1x256xf32, #tpu.memory_space<vmem>>, vector<1x256xf32>
    %4 = vector.broadcast %3 : vector<1x256xf32> to vector<128x256xf32>
    %5 = arith.addf %2, %4 : vector<128x256xf32>
    %cst_5 = arith.constant 0.000000e+00 : f32
    %6 = vector.broadcast %cst_5 : f32 to vector<128x256xf32>
    %7 = arith.maximumf %5, %6 : vector<128x256xf32>
    %c0_6 = arith.constant 0 : index
    %c0_7 = arith.constant 0 : index
    %8 = vector.load %arg4[%c0_6, %c0_7] : memref<256x256xf32, #tpu.memory_space<vmem>>, vector<256x256xf32>
    %cst_8 = arith.constant dense<0.000000e+00> : vector<128x256xf32>
    %9 = tpu.matmul %7, %8, %cst_8 {dimension_numbers = #tpu.dot_dimension_numbers<[1], [0], [0], [1], [0, 0, 1, 1], [], []>} : vector<128x256xf32>, vector<256x256xf32>, vector<128x256xf32> -> vector<128x256xf32>
    %c0_9 = arith.constant 0 : index
    %c0_10 = arith.constant 0 : index
    %10 = vector.load %arg5[%c0_9, %c0_10] : memref<1x256xf32, #tpu.memory_space<vmem>>, vector<1x256xf32>
    %11 = vector.broadcast %10 : vector<1x256xf32> to vector<128x256xf32>
    %12 = arith.addf %9, %11 : vector<128x256xf32>
    %cst_11 = arith.constant 0.000000e+00 : f32
    %13 = vector.broadcast %cst_11 : f32 to vector<128x256xf32>
    %14 = arith.maximumf %12, %13 : vector<128x256xf32>
    %c0_12 = arith.constant 0 : index
    %c0_13 = arith.constant 0 : index
    %15 = vector.load %arg6[%c0_12, %c0_13] : memref<256x128xf32, #tpu.memory_space<vmem>>, vector<256x128xf32>
    %cst_14 = arith.constant dense<0.000000e+00> : vector<128x128xf32>
    %16 = tpu.matmul %14, %15, %cst_14 {dimension_numbers = #tpu.dot_dimension_numbers<[1], [0], [0], [1], [0, 0, 1, 1], [], []>} : vector<128x256xf32>, vector<256x128xf32>, vector<128x128xf32> -> vector<128x128xf32>
    %c0_15 = arith.constant 0 : index
    %c0_16 = arith.constant 0 : index
    %17 = vector.load %arg7[%c0_15, %c0_16] : memref<1x128xf32, #tpu.memory_space<vmem>>, vector<1x128xf32>
    %18 = vector.broadcast %17 : vector<1x128xf32> to vector<128x128xf32>
    %19 = arith.addf %16, %18 : vector<128x128xf32>
    %cst_17 = arith.constant 0.000000e+00 : f32
    %20 = vector.broadcast %cst_17 : f32 to vector<128x128xf32>
    %21 = arith.maximumf %19, %20 : vector<128x128xf32>
    %c0_18 = arith.constant 0 : index
    %c0_19 = arith.constant 0 : index
    %22 = vector.load %arg8[%c0_18, %c0_19] : memref<128x128xf32, #tpu.memory_space<vmem>>, vector<128x128xf32>
    tpu.vector_store %arg8[%c0_18, %c0_19], %21 {strides = array<i32>} : memref<128x128xf32, #tpu.memory_space<vmem>>, vector<128x128xf32>,
    return
  }
  func.func @transform_0(%arg0: i32) -> (i32, i32) {
    %c0_i32 = arith.constant 0 : i32
    %c0_i32_0 = arith.constant 0 : i32
    return %arg0, %c0_i32 : i32, i32
  }
  func.func @transform_1(%arg0: i32) -> (i32, i32) {
    %c0_i32 = arith.constant 0 : i32
    %c0_i32_0 = arith.constant 0 : i32
    %c0_i32_1 = arith.constant 0 : i32
    return %c0_i32, %c0_i32_0 : i32, i32
  }
  func.func @transform_2(%arg0: i32) -> (i32, i32) {
    %c0_i32 = arith.constant 0 : i32
    %c0_i32_0 = arith.constant 0 : i32
    %c0_i32_1 = arith.constant 0 : i32
    return %c0_i32, %c0_i32_0 : i32, i32
  }
  func.func @transform_3(%arg0: i32) -> (i32, i32) {
    %c0_i32 = arith.constant 0 : i32
    %c0_i32_0 = arith.constant 0 : i32
    %c0_i32_1 = arith.constant 0 : i32
    return %c0_i32, %c0_i32_0 : i32, i32
  }
  func.func @transform_4(%arg0: i32) -> (i32, i32) {
    %c0_i32 = arith.constant 0 : i32
    %c0_i32_0 = arith.constant 0 : i32
    %c0_i32_1 = arith.constant 0 : i32
    return %c0_i32, %c0_i32_0 : i32, i32
  }
  func.func @transform_5(%arg0: i32) -> (i32, i32) {
    %c0_i32 = arith.constant 0 : i32
    %c0_i32_0 = arith.constant 0 : i32
    %c0_i32_1 = arith.constant 0 : i32
    return %c0_i32, %c0_i32_0 : i32, i32
  }
  func.func @transform_6(%arg0: i32) -> (i32, i32) {
    %c0_i32 = arith.constant 0 : i32
    %c0_i32_0 = arith.constant 0 : i32
    %c0_i32_1 = arith.constant 0 : i32
    return %c0_i32, %c0_i32_0 : i32, i32
  }
  func.func @transform_7(%arg0: i32) -> (i32, i32) {
    %c0_i32 = arith.constant 0 : i32
    %c0_i32_0 = arith.constant 0 : i32
    return %arg0, %c0_i32 : i32, i32
  }
}

</mosaic_0001>

<llo_original>
// kernel: tpu_custom_call.1
$region0: #{tpu_custom_call.1}
  #allocation0 [shape = 'u32[]', space=smem, size = 0x4, offset = 0x4, fixed_abs, tag = 'smem constant byte address 0x4 - core index']
  #allocation1 [shape = 'u32[144,128]{1,0:T(1,128)}', space=vmem, size = 0x12000, scoped, tag = 'internal scratch']
  %s0 = inlined_call_operand.hbm [shape: f32[512,128], index: 0, kind: input, shape index: {}]
  %s1 = inlined_call_operand.hbm [shape: f32[128,256], index: 1, kind: input, shape index: {}]
  %s2 = inlined_call_operand.vmem [shape: f32[1,256], index: 2, kind: input, shape index: {}]
  %s3 = inlined_call_operand.hbm [shape: f32[256,256], index: 3, kind: input, shape index: {}]
  %s4 = inlined_call_operand.vmem [shape: f32[1,256], index: 4, kind: input, shape index: {}]
  %s5 = inlined_call_operand.hbm [shape: f32[256,128], index: 5, kind: input, shape index: {}]
  %s6 = inlined_call_operand.vmem [shape: f32[1,128], index: 6, kind: input, shape index: {}]
  %s7 = inlined_call_operand.hbm [shape: f32[512,128], index: 7, kind: output, shape index: {}]
  %s8 = sld [smem:[#allocation0]]
  $region77: #{tpu_custom_call.1} parent=0
    _
  %s10 = ssub.s32 1, %s8
  %s11 = scalar_select 0, %s10, %s8
  $region1: #{tpu_custom_call.1} parent=0
    #allocation2 [shape = 'u8[131072]{0}', space=vmem, size = 0x20000, scoped, tag = 'input window, operand 0']
    #allocation3 [shape = 's32[2]{0}', space=sflag, size = 0x8, scoped, tag = 'scoped memory for tpu_custom_call.1']
    #allocation4 [shape = 's32[2]{0}', space=sflag, size = 0x8, scoped, tag = 'scoped memory for tpu_custom_call.1']
    #allocation5 [shape = 'u8[131072]{0}', space=vmem, size = 0x20000, scoped, tag = 'input window, operand 1, single buffered']
    #allocation6 [shape = 's32[1]{0}', space=sflag, size = 0x4, scoped, tag = 'scoped memory for tpu_custom_call.1']
    #allocation7 [shape = 'u8[262144]{0}', space=vmem, size = 0x40000, scoped, tag = 'input window, operand 3, single buffered']
    #allocation8 [shape = 'u8[131072]{0}', space=vmem, size = 0x20000, scoped, tag = 'input window, operand 5, single buffered']
    #allocation9 [shape = 's32[1]{0}', space=sflag, size = 0x4, scoped, tag = 'scoped memory for tpu_custom_call.1']
    #allocation10 [shape = 'u8[131072]{0}', space=vmem, size = 0x20000, scoped, tag = 'output window, operand 0']
    %12 = vsyncpa [#allocation3], 0
    %s13 = scalar_lea.sflag [#allocation3], 1
    %14 = vsyncpa %s13, 0
    %15 = vsyncpa [#allocation6], 0
    %16 = vsyncpa [#allocation9], 0
    %17 = vsyncpa [#allocation4], 0
    %s18 = scalar_lea.sflag [#allocation4], 1
    %19 = vsyncpa %s18, 0
    loop: start=0, step=1, limit=6
    $region2: #{tpu_custom_call.1} parent=1 // loop_pre_header
      _
    $region3: #{tpu_custom_call.1} parent=1 // loop_header
      %s21 = sphi 0, %s25
      %p22 = scmp.ge.s32.totalorder %s21, 6
      %s31 = sphi 0, %s33
      %s34 = sphi 0, %s31
      %s35 = sphi 0, %s34
      %s51 = sphi 0, %s35
      %s55 = sphi 0, %s55
      %s57 = sphi 0, %s55
      %s58 = sphi 0, %s57
      %s72 = sphi 0, %s58
      %s76 = sphi 0, %s76
      %s78 = sphi 0, %s76
      %s79 = sphi 0, %s78
      %s93 = sphi 0, %s79
      %s97 = sphi 0, %s97
      %s99 = sphi 0, %s97
      %s100 = sphi 0, %s99
      %s114 = sphi 0, %s100
      %s118 = sphi 0, %s118
      %s120 = sphi 0, %s118
      %s121 = sphi 0, %s120
      %s135 = sphi 0, %s121
      %s139 = sphi 0, %s139
      %s141 = sphi 0, %s139
      %s142 = sphi 0, %s141
      %s156 = sphi 0, %s142
      %s160 = sphi 0, %s160
      %s162 = sphi 0, %s160
      %s163 = sphi 0, %s162
      %s177 = sphi 0, %s163
      %s183 = sphi 0, %s185
      %s186 = sphi 0, %s183
      %s187 = sphi 0, %s186
      %s203 = sphi 0, %s187
    $region4: #{tpu_custom_call.1} parent=1 // loop_header_branch
      %24 = sbr.rel (%p22) target = $region8
    $region5: #{tpu_custom_call.1} parent=1 // loop_body
      %s26 = ssub.s32 %s21, 1
      %s27 = ssub.s32 %s21, 2
      %s28 = sadd.s32 %s21, 1
      %s29 = ssub.s32 %s21, %s28
      %p30 = scmp.eq.s32.totalorder %s29, 0
      %s32 = sadd.s32 %s31, 1
      %s33 = scalar_select %p30, %s31, %s32
      %p36 = pneg %p30
      %p37 = scmp.eq.s32.totalorder %s21, 3
      %p38 = por %p36, %p37
      %p39 = scmp.ne.s32.totalorder %s31, %s34
      %p40 = scmp.eq.s32.totalorder %s21, 0
      %p41 = por %p39, %p40
      %p42 = scmp.ne.s32.totalorder %s31, %s34
      %p43 = scmp.eq.s32.totalorder %s26, 3
      %p44 = por %p42, %p43
      %p45 = scmp.ne.s32.totalorder %s34, %s35
      %p46 = scmp.eq.s32.totalorder %s26, 0
      %p47 = por %p45, %p46
      %p48 = scmp.ne.s32.totalorder %s34, %s35
      %p49 = scmp.eq.s32.totalorder %s27, 3
      %p50 = por %p48, %p49
      %p52 = scmp.ne.s32.totalorder %s35, %s51
      %p53 = scmp.eq.s32.totalorder %s27, 0
      %p54 = por %p52, %p53
      %s56 = sadd.s32 %s55, 1
      %p59 = scmp.eq.s32.totalorder %s21, 3
      %p60 = scmp.ne.s32.totalorder %s55, %s57
      %p61 = scmp.eq.s32.totalorder %s21, 0
      %p62 = por %p60, %p61
      %p63 = scmp.ne.s32.totalorder %s55, %s57
      %p64 = scmp.eq.s32.totalorder %s26, 3
      %p65 = por %p63, %p64
      %p66 = scmp.ne.s32.totalorder %s57, %s58
      %p67 = scmp.eq.s32.totalorder %s26, 0
      %p68 = por %p66, %p67
      %p69 = scmp.ne.s32.totalorder %s57, %s58
      %p70 = scmp.eq.s32.totalorder %s27, 3
      %p71 = por %p69, %p70
      %p73 = scmp.ne.s32.totalorder %s58, %s72
      %p74 = scmp.eq.s32.totalorder %s27, 0
      %p75 = por %p73, %p74
      %s77 = sadd.s32 %s76, 1
      %p80 = scmp.eq.s32.totalorder %s21, 3
      %p81 = scmp.ne.s32.totalorder %s76, %s78
      %p82 = scmp.eq.s32.totalorder %s21, 0
      %p83 = por %p81, %p82
      %p84 = scmp.ne.s32.totalorder %s76, %s78
      %p85 = scmp.eq.s32.totalorder %s26, 3
      %p86 = por %p84, %p85
      %p87 = scmp.ne.s32.totalorder %s78, %s79
      %p88 = scmp.eq.s32.totalorder %s26, 0
      %p89 = por %p87, %p88
      %p90 = scmp.ne.s32.totalorder %s78, %s79
      %p91 = scmp.eq.s32.totalorder %s27, 3
      %p92 = por %p90, %p91
      %p94 = scmp.ne.s32.totalorder %s79, %s93
      %p95 = scmp.eq.s32.totalorder %s27, 0
      %p96 = por %p94, %p95
      %s98 = sadd.s32 %s97, 1
      %p101 = scmp.eq.s32.totalorder %s21, 3
      %p102 = scmp.ne.s32.totalorder %s97, %s99
      %p103 = scmp.eq.s32.totalorder %s21, 0
      %p104 = por %p102, %p103
      %p105 = scmp.ne.s32.totalorder %s97, %s99
      %p106 = scmp.eq.s32.totalorder %s26, 3
      %p107 = por %p105, %p106
      %p108 = scmp.ne.s32.totalorder %s99, %s100
      %p109 = scmp.eq.s32.totalorder %s26, 0
      %p110 = por %p108, %p109
      %p111 = scmp.ne.s32.totalorder %s99, %s100
      %p112 = scmp.eq.s32.totalorder %s27, 3
      %p113 = por %p111, %p112
      %p115 = scmp.ne.s32.totalorder %s100, %s114
      %p116 = scmp.eq.s32.totalorder %s27, 0
      %p117 = por %p115, %p116
      %s119 = sadd.s32 %s118, 1
      %p122 = scmp.eq.s32.totalorder %s21, 3
      %p123 = scmp.ne.s32.totalorder %s118, %s120
      %p124 = scmp.eq.s32.totalorder %s21, 0
      %p125 = por %p123, %p124
      %p126 = scmp.ne.s32.totalorder %s118, %s120
      %p127 = scmp.eq.s32.totalorder %s26, 3
      %p128 = por %p126, %p127
      %p129 = scmp.ne.s32.totalorder %s120, %s121
      %p130 = scmp.eq.s32.totalorder %s26, 0
      %p131 = por %p129, %p130
      %p132 = scmp.ne.s32.totalorder %s120, %s121
      %p133 = scmp.eq.s32.totalorder %s27, 3
      %p134 = por %p132, %p133
      %p136 = scmp.ne.s32.totalorder %s121, %s135
      %p137 = scmp.eq.s32.totalorder %s27, 0
      %p138 = por %p136, %p137
      %s140 = sadd.s32 %s139, 1
      %p143 = scmp.eq.s32.totalorder %s21, 3
      %p144 = scmp.ne.s32.totalorder %s139, %s141
      %p145 = scmp.eq.s32.totalorder %s21, 0
      %p146 = por %p144, %p145
      %p147 = scmp.ne.s32.totalorder %s139, %s141
      %p148 = scmp.eq.s32.totalorder %s26, 3
      %p149 = por %p147, %p148
      %p150 = scmp.ne.s32.totalorder %s141, %s142
      %p151 = scmp.eq.s32.totalorder %s26, 0
      %p152 = por %p150, %p151
      %p153 = scmp.ne.s32.totalorder %s141, %s142
      %p154 = scmp.eq.s32.totalorder %s27, 3
      %p155 = por %p153, %p154
      %p157 = scmp.ne.s32.totalorder %s142, %s156
      %p158 = scmp.eq.s32.totalorder %s27, 0
      %p159 = por %p157, %p158
      %s161 = sadd.s32 %s160, 1
      %p164 = scmp.eq.s32.totalorder %s21, 3
      %p165 = scmp.ne.s32.totalorder %s160, %s162
      %p166 = scmp.eq.s32.totalorder %s21, 0
      %p167 = por %p165, %p166
      %p168 = scmp.ne.s32.totalorder %s160, %s162
      %p169 = scmp.eq.s32.totalorder %s26, 3
      %p170 = por %p168, %p169
      %p171 = scmp.ne.s32.totalorder %s162, %s163
      %p172 = scmp.eq.s32.totalorder %s26, 0
      %p173 = por %p171, %p172
      %p174 = scmp.ne.s32.totalorder %s162, %s163
      %p175 = scmp.eq.s32.totalorder %s27, 3
      %p176 = por %p174, %p175
      %p178 = scmp.ne.s32.totalorder %s163, %s177
      %p179 = scmp.eq.s32.totalorder %s27, 0
      %p180 = por %p178, %p179
      %s181 = ssub.s32 %s21, %s28
      %p182 = scmp.eq.s32.totalorder %s181, 0
      %s184 = sadd.s32 %s183, 1
      %s185 = scalar_select %p182, %s183, %s184
      %p188 = pneg %p182
      %p189 = scmp.eq.s32.totalorder %s21, 3
      %p190 = por %p188, %p189
      %p191 = scmp.ne.s32.totalorder %s183, %s186
      %p192 = scmp.eq.s32.totalorder %s21, 0
      %p193 = por %p191, %p192
      %p194 = scmp.ne.s32.totalorder %s183, %s186
      %p195 = scmp.eq.s32.totalorder %s26, 3
      %p196 = por %p194, %p195
      %p197 = scmp.ne.s32.totalorder %s186, %s187
      %p198 = scmp.eq.s32.totalorder %s26, 0
      %p199 = por %p197, %p198
      %p200 = scmp.ne.s32.totalorder %s186, %s187
      %p201 = scmp.eq.s32.totalorder %s27, 3
      %p202 = por %p200, %p201
      %p204 = scmp.ne.s32.totalorder %s187, %s203
      %p205 = scmp.eq.s32.totalorder %s27, 0
      %p206 = por %p204, %p205
      %p207 = scmp.le.s32.totalorder 1, %s21
      %p208 = scmp.lt.s32.totalorder %s21, 5
      %p209 = pnand %p207, %p208
      %p210 = pneg %p209
      // Predicated region
      $region9: #{tpu_custom_call.1} parent=5 // pred_check
        _
      $region10: #{tpu_custom_call.1} parent=5 // pred_check_branch
        %212 = sbr.rel (%p209) target = $region12
      $region11: #{tpu_custom_call.1} parent=5 // pred_region
        %s213 = ssub.s32 %s21, 1
        // Predicated region
        $region13: #{tpu_custom_call.1} parent=11 // pred_check
          %p214 = pneg %p68
        $region14: #{tpu_custom_call.1} parent=11 // pred_check_branch
          %216 = sbr.rel (%p214) target = $region16
        $region15: #{tpu_custom_call.1} parent=11 // pred_region
          %s218 = ssub.s32 4096, 4096
          %219 = vsyncadd [#allocation6], %s218
          %s220 = sshll.u32 [#allocation5], 4
          %s221 = int_to_ptr.vmem [resolvable:$true] %s220
          %226 = dma.hbm_to_vmem [thread:$0]  %s1, 4096, %s221, [#allocation6], 256, 256, 16
        $region16: #{tpu_custom_call.1} parent=11 // pred_fallthru
          _
        // Predicated region
        $region17: #{tpu_custom_call.1} parent=11 // pred_check
          %p227 = pneg %p89
        $region18: #{tpu_custom_call.1} parent=11 // pred_check_branch
          %229 = sbr.rel (%p227) target = $region20
        $region19: #{tpu_custom_call.1} parent=11 // pred_region
          _
        $region20: #{tpu_custom_call.1} parent=11 // pred_fallthru
          _
        // Predicated region
        $region21: #{tpu_custom_call.1} parent=11 // pred_check
          %p230 = pneg %p110
        $region22: #{tpu_custom_call.1} parent=11 // pred_check_branch
          %232 = sbr.rel (%p230) target = $region24
        $region23: #{tpu_custom_call.1} parent=11 // pred_region
          %s234 = ssub.s32 8192, 8192
          %235 = vsyncadd [#allocation6], %s234
          %s236 = sshll.u32 [#allocation7], 4
          %s237 = int_to_ptr.vmem [resolvable:$true] %s236
          %242 = dma.hbm_to_vmem [thread:$0]  %s3, 8192, %s237, [#allocation6], 256, 256, 16
        $region24: #{tpu_custom_call.1} parent=11 // pred_fallthru
          _
        // Predicated region
        $region25: #{tpu_custom_call.1} parent=11 // pred_check
          %p243 = pneg %p131
        $region26: #{tpu_custom_call.1} parent=11 // pred_check_branch
          %245 = sbr.rel (%p243) target = $region28
        $region27: #{tpu_custom_call.1} parent=11 // pred_region
          _
        $region28: #{tpu_custom_call.1} parent=11 // pred_fallthru
          _
        // Predicated region
        $region29: #{tpu_custom_call.1} parent=11 // pred_check
          %p246 = pneg %p152
        $region30: #{tpu_custom_call.1} parent=11 // pred_check_branch
          %248 = sbr.rel (%p246) target = $region32
        $region31: #{tpu_custom_call.1} parent=11 // pred_region
          %s250 = ssub.s32 4096, 4096
          %251 = vsyncadd [#allocation9], %s250
          %s252 = sshll.u32 [#allocation8], 4
          %s253 = int_to_ptr.vmem [resolvable:$true] %s252
          %258 = dma.hbm_to_vmem [thread:$0]  %s5, 4096, %s253, [#allocation9], 128, 128, 8
        $region32: #{tpu_custom_call.1} parent=11 // pred_fallthru
          _
        // Predicated region
        $region33: #{tpu_custom_call.1} parent=11 // pred_check
          %p259 = pneg %p173
        $region34: #{tpu_custom_call.1} parent=11 // pred_check_branch
          %261 = sbr.rel (%p259) target = $region36
        $region35: #{tpu_custom_call.1} parent=11 // pred_region
          _
        $region36: #{tpu_custom_call.1} parent=11 // pred_fallthru
          _
      $region12: #{tpu_custom_call.1} parent=5 // pred_fallthru
        _
      %p262 = scmp.lt.s32.totalorder %s21, 4
      // Predicated region
      $region37: #{tpu_custom_call.1} parent=5 // pred_check
        %p263 = pneg %p262
      $region38: #{tpu_custom_call.1} parent=5 // pred_check_branch
        %265 = sbr.rel (%p263) target = $region40
      $region39: #{tpu_custom_call.1} parent=5 // pred_region
        // Predicated region
        $region41: #{tpu_custom_call.1} parent=39 // pred_check
          %p266 = pneg %p41
        $region42: #{tpu_custom_call.1} parent=39 // pred_check_branch
          %268 = sbr.rel (%p266) target = $region44
        $region43: #{tpu_custom_call.1} parent=39 // pred_region
          %s269 = sand.u32 %s31, 1
          %s270 = scalar_lea.sflag [#allocation3], %s269
          %s271 = sand.u32 %s31, 1
          %s272 = smul.addr %s271, 128
          %s273 = scalar_lea.vmem [#allocation2], %s272
          %s274 = smul.u32 16, %s21
          %s276 = ssub.s32 2048, 2048
          %277 = vsyncadd %s270, %s276
          %s278 = smul.addr %s274, 128
          %s279 = scalar_lea.hbm %s0, %s278
          %s280 = sshll.u32 %s273, 4
          %s281 = int_to_ptr.vmem [resolvable:$true] %s280
          %286 = dma.hbm_to_vmem [thread:$0]  %s279, 2048, %s281, %s270, 128, 128, 8
        $region44: #{tpu_custom_call.1} parent=39 // pred_fallthru
          _
      $region40: #{tpu_custom_call.1} parent=5 // pred_fallthru
        _
      %p287 = scmp.le.s32.totalorder 1, %s21
      %p288 = scmp.lt.s32.totalorder %s21, 5
      %p289 = pnand %p287, %p288
      %p290 = pneg %p289
      // Predicated region
      $region45: #{tpu_custom_call.1} parent=5 // pred_check
        _
      $region46: #{tpu_custom_call.1} parent=5 // pred_check_branch
        %292 = sbr.rel (%p289) target = $region48
      $region47: #{tpu_custom_call.1} parent=5 // pred_region
        %s293 = ssub.s32 %s21, 1
        %s294 = sand.u32 %s34, 1
        %s295 = scalar_lea.sflag [#allocation3], %s294
        %s296 = sand.u32 %s34, 1
        %s297 = smul.addr %s296, 128
        %s298 = scalar_lea.vmem [#allocation2], %s297
        // Predicated region
        $region49: #{tpu_custom_call.1} parent=47 // pred_check
          %p299 = pneg %p47
        $region50: #{tpu_custom_call.1} parent=47 // pred_check_branch
          %301 = sbr.rel (%p299) target = $region52
        $region51: #{tpu_custom_call.1} parent=47 // pred_region
          %302 = dma.done %s295, 2048
        $region52: #{tpu_custom_call.1} parent=47 // pred_fallthru
          _
        // Predicated region
        $region53: #{tpu_custom_call.1} parent=47 // pred_check
          %p303 = pneg %p68
        $region54: #{tpu_custom_call.1} parent=47 // pred_check_branch
          %305 = sbr.rel (%p303) target = $region56
        $region55: #{tpu_custom_call.1} parent=47 // pred_region
          %306 = dma.done [#allocation6], 4096
        $region56: #{tpu_custom_call.1} parent=47 // pred_fallthru
          _
        // Predicated region
        $region57: #{tpu_custom_call.1} parent=47 // pred_check
          %p307 = pneg %p110
        $region58: #{tpu_custom_call.1} parent=47 // pred_check_branch
          %309 = sbr.rel (%p307) target = $region60
        $region59: #{tpu_custom_call.1} parent=47 // pred_region
          %310 = dma.done [#allocation6], 8192
        $region60: #{tpu_custom_call.1} parent=47 // pred_fallthru
          _
        // Predicated region
        $region61: #{tpu_custom_call.1} parent=47 // pred_check
          %p311 = pneg %p152
        $region62: #{tpu_custom_call.1} parent=47 // pred_check_branch
          %313 = sbr.rel (%p311) target = $region64
        $region63: #{tpu_custom_call.1} parent=47 // pred_region
          %314 = dma.done [#allocation9], 4096
        $region64: #{tpu_custom_call.1} parent=47 // pred_fallthru
          _
        %s315 = sand.u32 %s34, 1
        %s316 = scalar_lea.sflag [#allocation3], %s315
        %s317 = sand.u32 %s34, 1
        %s318 = smul.addr %s317, 128
        %s319 = scalar_lea.vmem [#allocation2], %s318
        %p320 = pneg %p47
        %p321 = pneg %p44
        %p322 = pneg %p68
        %p323 = pneg %p65
        %p324 = pneg %p89
        %p325 = pneg %p86
        %p326 = pneg %p110
        %p327 = pneg %p107
        %p328 = pneg %p131
        %p329 = pneg %p128
        %p330 = pneg %p152
        %p331 = pneg %p149
        %p332 = pneg %p173
        %p333 = pneg %p170
        %p334 = pneg %p199
        %p335 = pneg %p196
        %s336 = sand.u32 %s186, 1
        %s337 = scalar_lea.sflag [#allocation4], %s336
        %s338 = sand.u32 %s186, 1
        %s339 = smul.addr %s338, 128
        %s340 = scalar_lea.vmem [#allocation10], %s339
        %s341 = smul.u32 16, %s26
        %s342 = smul.u32 16, %s26
        %v343 = vld [vmem:[%s298] sm:$0xff]
        %v344 = vld [vmem:[%s298 + $0x8] sm:$0xff]
        %v345 = vld [vmem:[%s298 + $0x10] sm:$0xff]
        %v346 = vld [vmem:[%s298 + $0x18] sm:$0xff]
        %v347 = vld [vmem:[%s298 + $0x20] sm:$0xff]
        %v348 = vld [vmem:[%s298 + $0x28] sm:$0xff]
        %v349 = vld [vmem:[%s298 + $0x30] sm:$0xff]
        %v350 = vld [vmem:[%s298 + $0x38] sm:$0xff]
        %v351 = vld [vmem:[%s298 + $0x40] sm:$0xff]
        %v352 = vld [vmem:[%s298 + $0x48] sm:$0xff]
        %v353 = vld [vmem:[%s298 + $0x50] sm:$0xff]
        %v354 = vld [vmem:[%s298 + $0x58] sm:$0xff]
        %v355 = vld [vmem:[%s298 + $0x60] sm:$0xff]
        %v356 = vld [vmem:[%s298 + $0x68] sm:$0xff]
        %v357 = vld [vmem:[%s298 + $0x70] sm:$0xff]
        %v358 = vld [vmem:[%s298 + $0x78] sm:$0xff]
        %v359 = vld [vmem:[#allocation5] sm:$0xff]
        %v360 = vld [vmem:[#allocation5 + $0x8] sm:$0xff]
        %v361 = vld [vmem:[#allocation5 + $0x10] sm:$0xff]
        %v362 = vld [vmem:[#allocation5 + $0x18] sm:$0xff]
        %v363 = vld [vmem:[#allocation5 + $0x20] sm:$0xff]
        %v364 = vld [vmem:[#allocation5 + $0x28] sm:$0xff]
        %v365 = vld [vmem:[#allocation5 + $0x30] sm:$0xff]
        %v366 = vld [vmem:[#allocation5 + $0x38] sm:$0xff]
        %v367 = vld [vmem:[#allocation5 + $0x40] sm:$0xff]
        %v368 = vld [vmem:[#allocation5 + $0x48] sm:$0xff]
        %v369 = vld [vmem:[#allocation5 + $0x50] sm:$0xff]
        %v370 = vld [vmem:[#allocation5 + $0x58] sm:$0xff]
        %v371 = vld [vmem:[#allocation5 + $0x60] sm:$0xff]
        %v372 = vld [vmem:[#allocation5 + $0x68] sm:$0xff]
        %v373 = vld [vmem:[#allocation5 + $0x70] sm:$0xff]
        %v374 = vld [vmem:[#allocation5 + $0x78] sm:$0xff]
        %v375 = vld [vmem:[#allocation5 + $0x80] sm:$0xff]
        %v376 = vld [vmem:[#allocation5 + $0x88] sm:$0xff]
        %v377 = vld [vmem:[#allocation5 + $0x90] sm:$0xff]
        %v378 = vld [vmem:[#allocation5 + $0x98] sm:$0xff]
        %v379 = vld [vmem:[#allocation5 + $0xa0] sm:$0xff]
        %v380 = vld [vmem:[#allocation5 + $0xa8] sm:$0xff]
        %v381 = vld [vmem:[#allocation5 + $0xb0] sm:$0xff]
        %v382 = vld [vmem:[#allocation5 + $0xb8] sm:$0xff]
        %v383 = vld [vmem:[#allocation5 + $0xc0] sm:$0xff]
        %v384 = vld [vmem:[#allocation5 + $0xc8] sm:$0xff]
        %v385 = vld [vmem:[#allocation5 + $0xd0] sm:$0xff]
        %v386 = vld [vmem:[#allocation5 + $0xd8] sm:$0xff]
        %v387 = vld [vmem:[#allocation5 + $0xe0] sm:$0xff]
        %v388 = vld [vmem:[#allocation5 + $0xe8] sm:$0xff]
        %v389 = vld [vmem:[#allocation5 + $0xf0] sm:$0xff]
        %v390 = vld [vmem:[#allocation5 + $0xf8] sm:$0xff]
        %v391 = vld [vmem:[%s2] sm:$0x3]
        %v393 = vlaneseq
        %v394 = vshrl.u32 %v393, 7
        %v395 = vsub.s32 0, %v394
        %v396 = vrot.slane %v391, %v395
        %v397 = vlaneseq
        %v398 = vshrl.u32 %v397, 7
        %v399 = vsub.s32 1, %v398
        %v400 = vrot.slane %v391, %v399
        %403 = vmatprep.subr.mxu0 %v360
        %404 = vmatpush1.msra.mxu0 %v359
        %405 = vmatprep.subr.mxu0 %v362
        %406 = vmatpush1.msra.mxu0 %v361
        %407 = vmatprep.subr.mxu0 %v364
        %408 = vmatpush1.msra.mxu0 %v363
        %409 = vmatprep.subr.mxu0 %v366
        %410 = vmatpush1.msra.mxu0 %v365
        %411 = vmatprep.subr.mxu0 %v368
        %412 = vmatpush1.msra.mxu0 %v367
        %413 = vmatprep.subr.mxu0 %v370
        %414 = vmatpush1.msra.mxu0 %v369
        %415 = vmatprep.subr.mxu0 %v372
        %416 = vmatpush1.msra.mxu0 %v371
        %417 = vmatprep.subr.mxu0 %v374
        %418 = vmatpush1.msra.mxu0 %v373
        %419 = vmatprep.subr.mxu0 %v376
        %420 = vmatpush1.msra.mxu0 %v375
        %421 = vmatprep.subr.mxu0 %v378
        %422 = vmatpush1.msra.mxu0 %v377
        %423 = vmatprep.subr.mxu0 %v380
        %424 = vmatpush1.msra.mxu0 %v379
        %425 = vmatprep.subr.mxu0 %v382
        %426 = vmatpush1.msra.mxu0 %v381
        %427 = vmatprep.subr.mxu0 %v384
        %428 = vmatpush1.msra.mxu0 %v383
        %429 = vmatprep.subr.mxu0 %v386
        %430 = vmatpush1.msra.mxu0 %v385
        %431 = vmatprep.subr.mxu0 %v388
        %432 = vmatpush1.msra.mxu0 %v387
        %433 = vmatprep.subr.mxu0 %v390
        %434 = vmatpush1.msra.mxu0 %v389
        %435 = vmatprep.subr.mxu0 0.0
        %436 = vmatpush1.msra.mxu0 0.0
        %437 = vmatprep.subr.mxu0 0.0
        %438 = vmatpush1.msra.mxu0 0.0
        %439 = vmatprep.subr.mxu0 0.0
        %440 = vmatpush1.msra.mxu0 0.0
        %441 = vmatprep.subr.mxu0 0.0
        %442 = vmatpush1.msra.mxu0 0.0
        %443 = vmatprep.subr.mxu0 0.0
        %444 = vmatpush1.msra.mxu0 0.0
        %445 = vmatprep.subr.mxu0 0.0
        %446 = vmatpush1.msra.mxu0 0.0
        %447 = vmatprep.subr.mxu0 0.0
        %448 = vmatpush1.msra.mxu0 0.0
        %449 = vmatprep.subr.mxu0 0.0
        %450 = vmatpush1.msra.mxu0 0.0
        %451 = vmatprep.subr.mxu0 0.0
        %452 = vmatpush1.msra.mxu0 0.0
        %453 = vmatprep.subr.mxu0 0.0
        %454 = vmatpush1.msra.mxu0 0.0
        %455 = vmatprep.subr.mxu0 0.0
        %456 = vmatpush1.msra.mxu0 0.0
        %457 = vmatprep.subr.mxu0 0.0
        %458 = vmatpush1.msra.mxu0 0.0
        %459 = vmatprep.subr.mxu0 0.0
        %460 = vmatpush1.msra.mxu0 0.0
        %461 = vmatprep.subr.mxu0 0.0
        %462 = vmatpush1.msra.mxu0 0.0
        %463 = vmatprep.subr.mxu0 0.0
        %464 = vmatpush1.msra.mxu0 0.0
        %465 = vmatprep.subr.mxu0 0.0
        %466 = vmatpush1.msra.mxu0 0.0
        %467 = vmatprep.mubr.f32.mxu0 0.0
        %468 = vmatmul.mubr.f32.gmra.mrb[0].mxu0 %v343
        %v469 = vpop.f32.mrb[0].mxu0
        %v470 = vadd.f32 %v396, %v469
        %v471 = vpop.f32.mrb[0].mxu0
        %v472 = vadd.f32 %v400, %v471
        %473 = vmatprep.mubr.f32.mxu0 0.0
        %474 = vmatmul.mubr.f32.gmra.mrb[0].mxu0 %v344
        %v475 = vpop.f32.mrb[0].mxu0
        %v476 = vadd.f32 %v396, %v475
        %v477 = vpop.f32.mrb[0].mxu0
        %v478 = vadd.f32 %v400, %v477
        %479 = vmatprep.mubr.f32.mxu0 0.0
        %480 = vmatmul.mubr.f32.gmra.mrb[0].mxu0 %v345
        %v481 = vpop.f32.mrb[0].mxu0
        %v482 = vadd.f32 %v396, %v481
        %v483 = vpop.f32.mrb[0].mxu0
        %v484 = vadd.f32 %v400, %v483
        %485 = vmatprep.mubr.f32.mxu0 0.0
        %486 = vmatmul.mubr.f32.gmra.mrb[0].mxu0 %v346
        %v487 = vpop.f32.mrb[0].mxu0
        %v488 = vadd.f32 %v396, %v487
        %v489 = vpop.f32.mrb[0].mxu0
        %v490 = vadd.f32 %v400, %v489
        %491 = vmatprep.mubr.f32.mxu0 0.0
        %492 = vmatmul.mubr.f32.gmra.mrb[0].mxu0 %v347
        %v493 = vpop.f32.mrb[0].mxu0
        %v494 = vadd.f32 %v396, %v493
        %v495 = vpop.f32.mrb[0].mxu0
        %v496 = vadd.f32 %v400, %v495
        %497 = vmatprep.mubr.f32.mxu0 0.0
        %498 = vmatmul.mubr.f32.gmra.mrb[0].mxu0 %v348
        %v499 = vpop.f32.mrb[0].mxu0
        %v500 = vadd.f32 %v396, %v499
        %v501 = vpop.f32.mrb[0].mxu0
        %v502 = vadd.f32 %v400, %v501
        %503 = vmatprep.mubr.f32.mxu0 0.0
        %504 = vmatmul.mubr.f32.gmra.mrb[0].mxu0 %v349
        %v505 = vpop.f32.mrb[0].mxu0
        %v506 = vadd.f32 %v396, %v505
        %v507 = vpop.f32.mrb[0].mxu0
        %v508 = vadd.f32 %v400, %v507
        %509 = vmatprep.mubr.f32.mxu0 0.0
        %510 = vmatmul.mubr.f32.gmra.mrb[0].mxu0 %v350
        %v511 = vpop.f32.mrb[0].mxu0
        %v512 = vadd.f32 %v396, %v511
        %v513 = vpop.f32.mrb[0].mxu0
        %v514 = vadd.f32 %v400, %v513
        %515 = vmatprep.mubr.f32.mxu0 0.0
        %516 = vmatmul.mubr.f32.gmra.mrb[0].mxu0 %v351
        %v517 = vpop.f32.mrb[0].mxu0
        %v518 = vadd.f32 %v396, %v517
        %v519 = vpop.f32.mrb[0].mxu0
        %v520 = vadd.f32 %v400, %v519
        %521 = vmatprep.mubr.f32.mxu0 0.0
        %522 = vmatmul.mubr.f32.gmra.mrb[0].mxu0 %v352
        %v523 = vpop.f32.mrb[0].mxu0
        %v524 = vadd.f32 %v396, %v523
        %v525 = vpop.f32.mrb[0].mxu0
        %v526 = vadd.f32 %v400, %v525
        %527 = vmatprep.mubr.f32.mxu0 0.0
        %528 = vmatmul.mubr.f32.gmra.mrb[0].mxu0 %v353
        %v529 = vpop.f32.mrb[0].mxu0
        %v530 = vadd.f32 %v396, %v529
        %v531 = vpop.f32.mrb[0].mxu0
        %v532 = vadd.f32 %v400, %v531
        %533 = vmatprep.mubr.f32.mxu0 0.0
        %534 = vmatmul.mubr.f32.gmra.mrb[0].mxu0 %v354
        %v535 = vpop.f32.mrb[0].mxu0
        %v536 = vadd.f32 %v396, %v535
        %v537 = vpop.f32.mrb[0].mxu0
        %v538 = vadd.f32 %v400, %v537
        %539 = vmatprep.mubr.f32.mxu0 0.0
        %540 = vmatmul.mubr.f32.gmra.mrb[0].mxu0 %v355
        %v541 = vpop.f32.mrb[0].mxu0
        %v542 = vadd.f32 %v396, %v541
        %v543 = vpop.f32.mrb[0].mxu0
        %v544 = vadd.f32 %v400, %v543
        %545 = vmatprep.mubr.f32.mxu0 0.0
        %546 = vmatmul.mubr.f32.gmra.mrb[0].mxu0 %v356
        %v547 = vpop.f32.mrb[0].mxu0
        %v548 = vadd.f32 %v396, %v547
        %v549 = vpop.f32.mrb[0].mxu0
        %v550 = vadd.f32 %v400, %v549
        %551 = vmatprep.mubr.f32.mxu0 0.0
        %552 = vmatmul.mubr.f32.gmra.mrb[0].mxu0 %v357
        %v553 = vpop.f32.mrb[0].mxu0
        %v554 = vadd.f32 %v396, %v553
        %v555 = vpop.f32.mrb[0].mxu0
        %v556 = vadd.f32 %v400, %v555
        %557 = vmatprep.mubr.f32.mxu0 0.0
        %558 = vmatmul.mubr.f32.gmra.mrb[0].mxu0 %v358
        %v559 = vpop.f32.mrb[0].mxu0
        %v560 = vadd.f32 %v396, %v559
        %v561 = vpop.f32.mrb[0].mxu0
        %v562 = vadd.f32 %v400, %v561
        %563 = vdwg.mxu0
        %v564 = vmax.f32 %v470, 0.0
        %v565 = vmax.f32 %v472, 0.0
        %v566 = vmax.f32 %v476, 0.0
        %v567 = vmax.f32 %v478, 0.0
        %v568 = vmax.f32 %v482, 0.0
        %v569 = vmax.f32 %v484, 0.0
        %v570 = vmax.f32 %v488, 0.0
        %v571 = vmax.f32 %v490, 0.0
        %v572 = vmax.f32 %v494, 0.0
        %v573 = vmax.f32 %v496, 0.0
        %v574 = vmax.f32 %v500, 0.0
        %v575 = vmax.f32 %v502, 0.0
        %v576 = vmax.f32 %v506, 0.0
        %v577 = vmax.f32 %v508, 0.0
        %v578 = vmax.f32 %v512, 0.0
        %v579 = vmax.f32 %v514, 0.0
        %v580 = vmax.f32 %v518, 0.0
        %v581 = vmax.f32 %v520, 0.0
        %v582 = vmax.f32 %v524, 0.0
        %v583 = vmax.f32 %v526, 0.0
        %v584 = vmax.f32 %v530, 0.0
        %v585 = vmax.f32 %v532, 0.0
        %v586 = vmax.f32 %v536, 0.0
        %v587 = vmax.f32 %v538, 0.0
        %v588 = vmax.f32 %v542, 0.0
        %v589 = vmax.f32 %v544, 0.0
        %v590 = vmax.f32 %v548, 0.0
        %v591 = vmax.f32 %v550, 0.0
        %v592 = vmax.f32 %v554, 0.0
        %v593 = vmax.f32 %v556, 0.0
        %v594 = vmax.f32 %v560, 0.0
        %v595 = vmax.f32 %v562, 0.0
        %v596 = vld [vmem:[#allocation7] sm:$0xff]
        %v597 = vld [vmem:[#allocation7 + $0x8] sm:$0xff]
        %v598 = vld [vmem:[#allocation7 + $0x10] sm:$0xff]
        %v599 = vld [vmem:[#allocation7 + $0x18] sm:$0xff]
        %v600 = vld [vmem:[#allocation7 + $0x20] sm:$0xff]
        %v601 = vld [vmem:[#allocation7 + $0x28] sm:$0xff]
        %v602 = vld [vmem:[#allocation7 + $0x30] sm:$0xff]
        %v603 = vld [vmem:[#allocation7 + $0x38] sm:$0xff]
        %v604 = vld [vmem:[#allocation7 + $0x40] sm:$0xff]
        %v605 = vld [vmem:[#allocation7 + $0x48] sm:$0xff]
        %v606 = vld [vmem:[#allocation7 + $0x50] sm:$0xff]
        %v607 = vld [vmem:[#allocation7 + $0x58] sm:$0xff]
        %v608 = vld [vmem:[#allocation7 + $0x60] sm:$0xff]
        %v609 = vld [vmem:[#allocation7 + $0x68] sm:$0xff]
        %v610 = vld [vmem:[#allocation7 + $0x70] sm:$0xff]
        %v611 = vld [vmem:[#allocation7 + $0x78] sm:$0xff]
        %v612 = vld [vmem:[#allocation7 + $0x80] sm:$0xff]
        %v613 = vld [vmem:[#allocation7 + $0x88] sm:$0xff]
        %v614 = vld [vmem:[#allocation7 + $0x90] sm:$0xff]
        %v615 = vld [vmem:[#allocation7 + $0x98] sm:$0xff]
        %v616 = vld [vmem:[#allocation7 + $0xa0] sm:$0xff]
        %v617 = vld [vmem:[#allocation7 + $0xa8] sm:$0xff]
        %v618 = vld [vmem:[#allocation7 + $0xb0] sm:$0xff]
        %v619 = vld [vmem:[#allocation7 + $0xb8] sm:$0xff]
        %v620 = vld [vmem:[#allocation7 + $0xc0] sm:$0xff]
        %v621 = vld [vmem:[#allocation7 + $0xc8] sm:$0xff]
        %v622 = vld [vmem:[#allocation7 + $0xd0] sm:$0xff]
        %v623 = vld [vmem:[#allocation7 + $0xd8] sm:$0xff]
        %v624 = vld [vmem:[#allocation7 + $0xe0] sm:$0xff]
        %v625 = vld [vmem:[#allocation7 + $0xe8] sm:$0xff]
        %v626 = vld [vmem:[#allocation7 + $0xf0] sm:$0xff]
        %v627 = vld [vmem:[#allocation7 + $0xf8] sm:$0xff]
        %v628 = vld [vmem:[#allocation7 + $0x100] sm:$0xff]
        %v629 = vld [vmem:[#allocation7 + $0x108] sm:$0xff]
        %v630 = vld [vmem:[#allocation7 + $0x110] sm:$0xff]
        %v631 = vld [vmem:[#allocation7 + $0x118] sm:$0xff]
        %v632 = vld [vmem:[#allocation7 + $0x120] sm:$0xff]
        %v633 = vld [vmem:[#allocation7 + $0x128] sm:$0xff]
        %v634 = vld [vmem:[#allocation7 + $0x130] sm:$0xff]
        %v635 = vld [vmem:[#allocation7 + $0x138] sm:$0xff]
        %v636 = vld [vmem:[#allocation7 + $0x140] sm:$0xff]
        %v637 = vld [vmem:[#allocation7 + $0x148] sm:$0xff]
        %v638 = vld [vmem:[#allocation7 + $0x150] sm:$0xff]
        %v639 = vld [vmem:[#allocation7 + $0x158] sm:$0xff]
        %v640 = vld [vmem:[#allocation7 + $0x160] sm:$0xff]
        %v641 = vld [vmem:[#allocation7 + $0x168] sm:$0xff]
        %v642 = vld [vmem:[#allocation7 + $0x170] sm:$0xff]
        %v643 = vld [vmem:[#allocation7 + $0x178] sm:$0xff]
        %v644 = vld [vmem:[#allocation7 + $0x180] sm:$0xff]
        %v645 = vld [vmem:[#allocation7 + $0x188] sm:$0xff]
        %v646 = vld [vmem:[#allocation7 + $0x190] sm:$0xff]
        %v647 = vld [vmem:[#allocation7 + $0x198] sm:$0xff]
        %v648 = vld [vmem:[#allocation7 + $0x1a0] sm:$0xff]
        %v649 = vld [vmem:[#allocation7 + $0x1a8] sm:$0xff]
        %v650 = vld [vmem:[#allocation7 + $0x1b0] sm:$0xff]
        %v651 = vld [vmem:[#allocation7 + $0x1b8] sm:$0xff]
        %v652 = vld [vmem:[#allocation7 + $0x1c0] sm:$0xff]
        %v653 = vld [vmem:[#allocation7 + $0x1c8] sm:$0xff]
        %v654 = vld [vmem:[#allocation7 + $0x1d0] sm:$0xff]
        %v655 = vld [vmem:[#allocation7 + $0x1d8] sm:$0xff]
        %v656 = vld [vmem:[#allocation7 + $0x1e0] sm:$0xff]
        %v657 = vld [vmem:[#allocation7 + $0x1e8] sm:$0xff]
        %v658 = vld [vmem:[#allocation7 + $0x1f0] sm:$0xff]
        %v659 = vld [vmem:[#allocation7 + $0x1f8] sm:$0xff]
        %v660 = vld [vmem:[%s4] sm:$0x3]
        %v662 = vlaneseq
        %v663 = vshrl.u32 %v662, 7
        %v664 = vsub.s32 0, %v663
        %v665 = vrot.slane %v660, %v664
        %v666 = vlaneseq
        %v667 = vshrl.u32 %v666, 7
        %v668 = vsub.s32 1, %v667
        %v669 = vrot.slane %v660, %v668
        %672 = vmatprep.subr.mxu0 %v597
        %673 = vmatpush1.msra.mxu0 %v596
        %674 = vmatprep.subr.mxu0 %v599
        %675 = vmatpush1.msra.mxu0 %v598
        %676 = vmatprep.subr.mxu0 %v601
        %677 = vmatpush1.msra.mxu0 %v600
        %678 = vmatprep.subr.mxu0 %v603
        %679 = vmatpush1.msra.mxu0 %v602
        %680 = vmatprep.subr.mxu0 %v605
        %681 = vmatpush1.msra.mxu0 %v604
        %682 = vmatprep.subr.mxu0 %v607
        %683 = vmatpush1.msra.mxu0 %v606
        %684 = vmatprep.subr.mxu0 %v609
        %685 = vmatpush1.msra.mxu0 %v608
        %686 = vmatprep.subr.mxu0 %v611
        %687 = vmatpush1.msra.mxu0 %v610
        %688 = vmatprep.subr.mxu0 %v613
        %689 = vmatpush1.msra.mxu0 %v612
        %690 = vmatprep.subr.mxu0 %v615
        %691 = vmatpush1.msra.mxu0 %v614
        %692 = vmatprep.subr.mxu0 %v617
        %693 = vmatpush1.msra.mxu0 %v616
        %694 = vmatprep.subr.mxu0 %v619
        %695 = vmatpush1.msra.mxu0 %v618
        %696 = vmatprep.subr.mxu0 %v621
        %697 = vmatpush1.msra.mxu0 %v620
        %698 = vmatprep.subr.mxu0 %v623
        %699 = vmatpush1.msra.mxu0 %v622
        %700 = vmatprep.subr.mxu0 %v625
        %701 = vmatpush1.msra.mxu0 %v624
        %702 = vmatprep.subr.mxu0 %v627
        %703 = vmatpush1.msra.mxu0 %v626
        %704 = vmatprep.subr.mxu0 %v629
        %705 = vmatpush1.msra.mxu0 %v628
        %706 = vmatprep.subr.mxu0 %v631
        %707 = vmatpush1.msra.mxu0 %v630
        %708 = vmatprep.subr.mxu0 %v633
        %709 = vmatpush1.msra.mxu0 %v632
        %710 = vmatprep.subr.mxu0 %v635
        %711 = vmatpush1.msra.mxu0 %v634
        %712 = vmatprep.subr.mxu0 %v637
        %713 = vmatpush1.msra.mxu0 %v636
        %714 = vmatprep.subr.mxu0 %v639
        %715 = vmatpush1.msra.mxu0 %v638
        %716 = vmatprep.subr.mxu0 %v641
        %717 = vmatpush1.msra.mxu0 %v640
        %718 = vmatprep.subr.mxu0 %v643
        %719 = vmatpush1.msra.mxu0 %v642
        %720 = vmatprep.subr.mxu0 %v645
        %721 = vmatpush1.msra.mxu0 %v644
        %722 = vmatprep.subr.mxu0 %v647
        %723 = vmatpush1.msra.mxu0 %v646
        %724 = vmatprep.subr.mxu0 %v649
        %725 = vmatpush1.msra.mxu0 %v648
        %726 = vmatprep.subr.mxu0 %v651
        %727 = vmatpush1.msra.mxu0 %v650
        %728 = vmatprep.subr.mxu0 %v653
        %729 = vmatpush1.msra.mxu0 %v652
        %730 = vmatprep.subr.mxu0 %v655
        %731 = vmatpush1.msra.mxu0 %v654
        %732 = vmatprep.subr.mxu0 %v657
        %733 = vmatpush1.msra.mxu0 %v656
        %734 = vmatprep.subr.mxu0 %v659
        %735 = vmatpush1.msra.mxu0 %v658
        %736 = vmatprep.mubr.f32.mxu0 %v565
        %737 = vmatmul.mubr.f32.gmra.mrb[0].mxu0 %v564
        %v738 = vpop.f32.mrb[0].mxu0
        %v739 = vadd.f32 %v665, %v738
        %v740 = vpop.f32.mrb[0].mxu0
        %v741 = vadd.f32 %v669, %v740
        %742 = vmatprep.mubr.f32.mxu0 %v567
        %743 = vmatmul.mubr.f32.gmra.mrb[0].mxu0 %v566
        %v744 = vpop.f32.mrb[0].mxu0
        %v745 = vadd.f32 %v665, %v744
        %v746 = vpop.f32.mrb[0].mxu0
        %v747 = vadd.f32 %v669, %v746
        %748 = vmatprep.mubr.f32.mxu0 %v569
        %749 = vmatmul.mubr.f32.gmra.mrb[0].mxu0 %v568
        %v750 = vpop.f32.mrb[0].mxu0
        %v751 = vadd.f32 %v665, %v750
        %v752 = vpop.f32.mrb[0].mxu0
        %v753 = vadd.f32 %v669, %v752
        %754 = vmatprep.mubr.f32.mxu0 %v571
        %755 = vmatmul.mubr.f32.gmra.mrb[0].mxu0 %v570
        %v756 = vpop.f32.mrb[0].mxu0
        %v757 = vadd.f32 %v665, %v756
        %v758 = vpop.f32.mrb[0].mxu0
        %v759 = vadd.f32 %v669, %v758
        %760 = vmatprep.mubr.f32.mxu0 %v573
        %761 = vmatmul.mubr.f32.gmra.mrb[0].mxu0 %v572
        %v762 = vpop.f32.mrb[0].mxu0
        %v763 = vadd.f32 %v665, %v762
        %v764 = vpop.f32.mrb[0].mxu0
        %v765 = vadd.f32 %v669, %v764
        %766 = vmatprep.mubr.f32.mxu0 %v575
        %767 = vmatmul.mubr.f32.gmra.mrb[0].mxu0 %v574
        %v768 = vpop.f32.mrb[0].mxu0
        %v769 = vadd.f32 %v665, %v768
        %v770 = vpop.f32.mrb[0].mxu0
        %v771 = vadd.f32 %v669, %v770
        %772 = vmatprep.mubr.f32.mxu0 %v577
        %773 = vmatmul.mubr.f32.gmra.mrb[0].mxu0 %v576
        %v774 = vpop.f32.mrb[0].mxu0
        %v775 = vadd.f32 %v665, %v774
        %v776 = vpop.f32.mrb[0].mxu0
        %v777 = vadd.f32 %v669, %v776
        %778 = vmatprep.mubr.f32.mxu0 %v579
        %779 = vmatmul.mubr.f32.gmra.mrb[0].mxu0 %v578
        %v780 = vpop.f32.mrb[0].mxu0
        %v781 = vadd.f32 %v665, %v780
        %v782 = vpop.f32.mrb[0].mxu0
        %v783 = vadd.f32 %v669, %v782
        %784 = vmatprep.mubr.f32.mxu0 %v581
        %785 = vmatmul.mubr.f32.gmra.mrb[0].mxu0 %v580
        %v786 = vpop.f32.mrb[0].mxu0
        %v787 = vadd.f32 %v665, %v786
        %v788 = vpop.f32.mrb[0].mxu0
        %v789 = vadd.f32 %v669, %v788
        %790 = vmatprep.mubr.f32.mxu0 %v583
        %791 = vmatmul.mubr.f32.gmra.mrb[0].mxu0 %v582
        %v792 = vpop.f32.mrb[0].mxu0
        %v793 = vadd.f32 %v665, %v792
        %v794 = vpop.f32.mrb[0].mxu0
        %v795 = vadd.f32 %v669, %v794
        %796 = vmatprep.mubr.f32.mxu0 %v585
        %797 = vmatmul.mubr.f32.gmra.mrb[0].mxu0 %v584
        %v798 = vpop.f32.mrb[0].mxu0
        %v799 = vadd.f32 %v665, %v798
        %v800 = vpop.f32.mrb[0].mxu0
        %v801 = vadd.f32 %v669, %v800
        %802 = vmatprep.mubr.f32.mxu0 %v587
        %803 = vmatmul.mubr.f32.gmra.mrb[0].mxu0 %v586
        %v804 = vpop.f32.mrb[0].mxu0
        %v805 = vadd.f32 %v665, %v804
        %v806 = vpop.f32.mrb[0].mxu0
        %v807 = vadd.f32 %v669, %v806
        %808 = vmatprep.mubr.f32.mxu0 %v589
        %809 = vmatmul.mubr.f32.gmra.mrb[0].mxu0 %v588
        %v810 = vpop.f32.mrb[0].mxu0
        %v811 = vadd.f32 %v665, %v810
        %v812 = vpop.f32.mrb[0].mxu0
        %v813 = vadd.f32 %v669, %v812
        %814 = vmatprep.mubr.f32.mxu0 %v591
        %815 = vmatmul.mubr.f32.gmra.mrb[0].mxu0 %v590
        %v816 = vpop.f32.mrb[0].mxu0
        %v817 = vadd.f32 %v665, %v816
        %v818 = vpop.f32.mrb[0].mxu0
        %v819 = vadd.f32 %v669, %v818
        %820 = vmatprep.mubr.f32.mxu0 %v593
        %821 = vmatmul.mubr.f32.gmra.mrb[0].mxu0 %v592
        %v822 = vpop.f32.mrb[0].mxu0
        %v823 = vadd.f32 %v665, %v822
        %v824 = vpop.f32.mrb[0].mxu0
        %v825 = vadd.f32 %v669, %v824
        %826 = vmatprep.mubr.f32.mxu0 %v595
        %827 = vmatmul.mubr.f32.gmra.mrb[0].mxu0 %v594
        %v828 = vpop.f32.mrb[0].mxu0
        %v829 = vadd.f32 %v665, %v828
        %v830 = vpop.f32.mrb[0].mxu0
        %v831 = vadd.f32 %v669, %v830
        %832 = vdwg.mxu0
        %v833 = vmax.f32 %v739, 0.0
        %v834 = vmax.f32 %v741, 0.0
        %v835 = vmax.f32 %v745, 0.0
        %v836 = vmax.f32 %v747, 0.0
        %v837 = vmax.f32 %v751, 0.0
        %v838 = vmax.f32 %v753, 0.0
        %v839 = vmax.f32 %v757, 0.0
        %v840 = vmax.f32 %v759, 0.0
        %v841 = vmax.f32 %v763, 0.0
        %v842 = vmax.f32 %v765, 0.0
        %v843 = vmax.f32 %v769, 0.0
        %v844 = vmax.f32 %v771, 0.0
        %v845 = vmax.f32 %v775, 0.0
        %v846 = vmax.f32 %v777, 0.0
        %v847 = vmax.f32 %v781, 0.0
        %v848 = vmax.f32 %v783, 0.0
        %v849 = vmax.f32 %v787, 0.0
        %v850 = vmax.f32 %v789, 0.0
        %v851 = vmax.f32 %v793, 0.0
        %v852 = vmax.f32 %v795, 0.0
        %v853 = vmax.f32 %v799, 0.0
        %v854 = vmax.f32 %v801, 0.0
        %v855 = vmax.f32 %v805, 0.0
        %v856 = vmax.f32 %v807, 0.0
        %v857 = vmax.f32 %v811, 0.0
        %v858 = vmax.f32 %v813, 0.0
        %v859 = vmax.f32 %v817, 0.0
        %v860 = vmax.f32 %v819, 0.0
        %v861 = vmax.f32 %v823, 0.0
        %v862 = vmax.f32 %v825, 0.0
        %v863 = vmax.f32 %v829, 0.0
        %v864 = vmax.f32 %v831, 0.0
        %v865 = vld [vmem:[#allocation8] sm:$0xff]
        %v866 = vld [vmem:[#allocation8 + $0x8] sm:$0xff]
        %v867 = vld [vmem:[#allocation8 + $0x10] sm:$0xff]
        %v868 = vld [vmem:[#allocation8 + $0x18] sm:$0xff]
        %v869 = vld [vmem:[#allocation8 + $0x20] sm:$0xff]
        %v870 = vld [vmem:[#allocation8 + $0x28] sm:$0xff]
        %v871 = vld [vmem:[#allocation8 + $0x30] sm:$0xff]
        %v872 = vld [vmem:[#allocation8 + $0x38] sm:$0xff]
        %v873 = vld [vmem:[#allocation8 + $0x40] sm:$0xff]
        %v874 = vld [vmem:[#allocation8 + $0x48] sm:$0xff]
        %v875 = vld [vmem:[#allocation8 + $0x50] sm:$0xff]
        %v876 = vld [vmem:[#allocation8 + $0x58] sm:$0xff]
        %v877 = vld [vmem:[#allocation8 + $0x60] sm:$0xff]
        %v878 = vld [vmem:[#allocation8 + $0x68] sm:$0xff]
        %v879 = vld [vmem:[#allocation8 + $0x70] sm:$0xff]
        %v880 = vld [vmem:[#allocation8 + $0x78] sm:$0xff]
        %v881 = vld [vmem:[#allocation8 + $0x80] sm:$0xff]
        %v882 = vld [vmem:[#allocation8 + $0x88] sm:$0xff]
        %v883 = vld [vmem:[#allocation8 + $0x90] sm:$0xff]
        %v884 = vld [vmem:[#allocation8 + $0x98] sm:$0xff]
        %v885 = vld [vmem:[#allocation8 + $0xa0] sm:$0xff]
        %v886 = vld [vmem:[#allocation8 + $0xa8] sm:$0xff]
        %v887 = vld [vmem:[#allocation8 + $0xb0] sm:$0xff]
        %v888 = vld [vmem:[#allocation8 + $0xb8] sm:$0xff]
        %v889 = vld [vmem:[#allocation8 + $0xc0] sm:$0xff]
        %v890 = vld [vmem:[#allocation8 + $0xc8] sm:$0xff]
        %v891 = vld [vmem:[#allocation8 + $0xd0] sm:$0xff]
        %v892 = vld [vmem:[#allocation8 + $0xd8] sm:$0xff]
        %v893 = vld [vmem:[#allocation8 + $0xe0] sm:$0xff]
        %v894 = vld [vmem:[#allocation8 + $0xe8] sm:$0xff]
        %v895 = vld [vmem:[#allocation8 + $0xf0] sm:$0xff]
        %v896 = vld [vmem:[#allocation8 + $0xf8] sm:$0xff]
        %v897 = vld [vmem:[%s6] sm:$0x1]
        %v899 = vlaneseq
        %v900 = vshrl.u32 %v899, 7
        %v901 = vsub.s32 0, %v900
        %v902 = vrot.slane %v897, %v901
        %904 = vmatprep.subr.mxu0 0.0
        %905 = vmatpush1.msra.mxu0 %v865
        %906 = vmatprep.subr.mxu0 0.0
        %907 = vmatpush1.msra.mxu0 %v866
        %908 = vmatprep.subr.mxu0 0.0
        %909 = vmatpush1.msra.mxu0 %v867
        %910 = vmatprep.subr.mxu0 0.0
        %911 = vmatpush1.msra.mxu0 %v868
        %912 = vmatprep.subr.mxu0 0.0
        %913 = vmatpush1.msra.mxu0 %v869
        %914 = vmatprep.subr.mxu0 0.0
        %915 = vmatpush1.msra.mxu0 %v870
        %916 = vmatprep.subr.mxu0 0.0
        %917 = vmatpush1.msra.mxu0 %v871
        %918 = vmatprep.subr.mxu0 0.0
        %919 = vmatpush1.msra.mxu0 %v872
        %920 = vmatprep.subr.mxu0 0.0
        %921 = vmatpush1.msra.mxu0 %v873
        %922 = vmatprep.subr.mxu0 0.0
        %923 = vmatpush1.msra.mxu0 %v874
        %924 = vmatprep.subr.mxu0 0.0
        %925 = vmatpush1.msra.mxu0 %v875
        %926 = vmatprep.subr.mxu0 0.0
        %927 = vmatpush1.msra.mxu0 %v876
        %928 = vmatprep.subr.mxu0 0.0
        %929 = vmatpush1.msra.mxu0 %v877
        %930 = vmatprep.subr.mxu0 0.0
        %931 = vmatpush1.msra.mxu0 %v878
        %932 = vmatprep.subr.mxu0 0.0
        %933 = vmatpush1.msra.mxu0 %v879
        %934 = vmatprep.subr.mxu0 0.0
        %935 = vmatpush1.msra.mxu0 %v880
        %936 = vmatprep.subr.mxu0 0.0
        %937 = vmatpush1.msra.mxu0 %v881
        %938 = vmatprep.subr.mxu0 0.0
        %939 = vmatpush1.msra.mxu0 %v882
        %940 = vmatprep.subr.mxu0 0.0
        %941 = vmatpush1.msra.mxu0 %v883
        %942 = vmatprep.subr.mxu0 0.0
        %943 = vmatpush1.msra.mxu0 %v884
        %944 = vmatprep.subr.mxu0 0.0
        %945 = vmatpush1.msra.mxu0 %v885
        %946 = vmatprep.subr.mxu0 0.0
        %947 = vmatpush1.msra.mxu0 %v886
        %948 = vmatprep.subr.mxu0 0.0
        %949 = vmatpush1.msra.mxu0 %v887
        %950 = vmatprep.subr.mxu0 0.0
        %951 = vmatpush1.msra.mxu0 %v888
        %952 = vmatprep.subr.mxu0 0.0
        %953 = vmatpush1.msra.mxu0 %v889
        %954 = vmatprep.subr.mxu0 0.0
        %955 = vmatpush1.msra.mxu0 %v890
        %956 = vmatprep.subr.mxu0 0.0
        %957 = vmatpush1.msra.mxu0 %v891
        %958 = vmatprep.subr.mxu0 0.0
        %959 = vmatpush1.msra.mxu0 %v892
        %960 = vmatprep.subr.mxu0 0.0
        %961 = vmatpush1.msra.mxu0 %v893
        %962 = vmatprep.subr.mxu0 0.0
        %963 = vmatpush1.msra.mxu0 %v894
        %964 = vmatprep.subr.mxu0 0.0
        %965 = vmatpush1.msra.mxu0 %v895
        %966 = vmatprep.subr.mxu0 0.0
        %967 = vmatpush1.msra.mxu0 %v896
        %968 = vmatprep.mubr.f32.mxu0 %v834
        %969 = vmatmul.mubr.f32.gmra.mrb[0].mxu0 %v833
        %v970 = vpop.f32.mrb[0].mxu0
        %v971 = vadd.f32 %v902, %v970
        %v972 = vpop.f32.mrb[0].mxu0
        %973 = vmatprep.mubr.f32.mxu0 %v836
        %974 = vmatmul.mubr.f32.gmra.mrb[0].mxu0 %v835
        %v975 = vpop.f32.mrb[0].mxu0
        %v976 = vadd.f32 %v902, %v975
        %v977 = vpop.f32.mrb[0].mxu0
        %978 = vmatprep.mubr.f32.mxu0 %v838
        %979 = vmatmul.mubr.f32.gmra.mrb[0].mxu0 %v837
        %v980 = vpop.f32.mrb[0].mxu0
        %v981 = vadd.f32 %v902, %v980
        %v982 = vpop.f32.mrb[0].mxu0
        %983 = vmatprep.mubr.f32.mxu0 %v840
        %984 = vmatmul.mubr.f32.gmra.mrb[0].mxu0 %v839
        %v985 = vpop.f32.mrb[0].mxu0
        %v986 = vadd.f32 %v902, %v985
        %v987 = vpop.f32.mrb[0].mxu0
        %988 = vmatprep.mubr.f32.mxu0 %v842
        %989 = vmatmul.mubr.f32.gmra.mrb[0].mxu0 %v841
        %v990 = vpop.f32.mrb[0].mxu0
        %v991 = vadd.f32 %v902, %v990
        %v992 = vpop.f32.mrb[0].mxu0
        %993 = vmatprep.mubr.f32.mxu0 %v844
        %994 = vmatmul.mubr.f32.gmra.mrb[0].mxu0 %v843
        %v995 = vpop.f32.mrb[0].mxu0
        %v996 = vadd.f32 %v902, %v995
        %v997 = vpop.f32.mrb[0].mxu0
        %998 = vmatprep.mubr.f32.mxu0 %v846
        %999 = vmatmul.mubr.f32.gmra.mrb[0].mxu0 %v845
        %v1000 = vpop.f32.mrb[0].mxu0
        %v1001 = vadd.f32 %v902, %v1000
        %v1002 = vpop.f32.mrb[0].mxu0
        %1003 = vmatprep.mubr.f32.mxu0 %v848
        %1004 = vmatmul.mubr.f32.gmra.mrb[0].mxu0 %v847
        %v1005 = vpop.f32.mrb[0].mxu0
        %v1006 = vadd.f32 %v902, %v1005
        %v1007 = vpop.f32.mrb[0].mxu0
        %1008 = vmatprep.mubr.f32.mxu0 %v850
        %1009 = vmatmul.mubr.f32.gmra.mrb[0].mxu0 %v849
        %v1010 = vpop.f32.mrb[0].mxu0
        %v1011 = vadd.f32 %v902, %v1010
        %v1012 = vpop.f32.mrb[0].mxu0
        %1013 = vmatprep.mubr.f32.mxu0 %v852
        %1014 = vmatmul.mubr.f32.gmra.mrb[0].mxu0 %v851
        %v1015 = vpop.f32.mrb[0].mxu0
        %v1016 = vadd.f32 %v902, %v1015
        %v1017 = vpop.f32.mrb[0].mxu0
        %1018 = vmatprep.mubr.f32.mxu0 %v854
        %1019 = vmatmul.mubr.f32.gmra.mrb[0].mxu0 %v853
        %v1020 = vpop.f32.mrb[0].mxu0
        %v1021 = vadd.f32 %v902, %v1020
        %v1022 = vpop.f32.mrb[0].mxu0
        %1023 = vmatprep.mubr.f32.mxu0 %v856
        %1024 = vmatmul.mubr.f32.gmra.mrb[0].mxu0 %v855
        %v1025 = vpop.f32.mrb[0].mxu0
        %v1026 = vadd.f32 %v902, %v1025
        %v1027 = vpop.f32.mrb[0].mxu0
        %1028 = vmatprep.mubr.f32.mxu0 %v858
        %1029 = vmatmul.mubr.f32.gmra.mrb[0].mxu0 %v857
        %v1030 = vpop.f32.mrb[0].mxu0
        %v1031 = vadd.f32 %v902, %v1030
        %v1032 = vpop.f32.mrb[0].mxu0
        %1033 = vmatprep.mubr.f32.mxu0 %v860
        %1034 = vmatmul.mubr.f32.gmra.mrb[0].mxu0 %v859
        %v1035 = vpop.f32.mrb[0].mxu0
        %v1036 = vadd.f32 %v902, %v1035
        %v1037 = vpop.f32.mrb[0].mxu0
        %1038 = vmatprep.mubr.f32.mxu0 %v862
        %1039 = vmatmul.mubr.f32.gmra.mrb[0].mxu0 %v861
        %v1040 = vpop.f32.mrb[0].mxu0
        %v1041 = vadd.f32 %v902, %v1040
        %v1042 = vpop.f32.mrb[0].mxu0
        %1043 = vmatprep.mubr.f32.mxu0 %v864
        %1044 = vmatmul.mubr.f32.gmra.mrb[0].mxu0 %v863
        %v1045 = vpop.f32.mrb[0].mxu0
        %v1046 = vadd.f32 %v902, %v1045
        %v1047 = vpop.f32.mrb[0].mxu0
        %1048 = vdwg.mxu0
        %v1049 = vmax.f32 %v971, 0.0
        %v1050 = vmax.f32 %v976, 0.0
        %v1051 = vmax.f32 %v981, 0.0
        %v1052 = vmax.f32 %v986, 0.0
        %v1053 = vmax.f32 %v991, 0.0
        %v1054 = vmax.f32 %v996, 0.0
        %v1055 = vmax.f32 %v1001, 0.0
        %v1056 = vmax.f32 %v1006, 0.0
        %v1057 = vmax.f32 %v1011, 0.0
        %v1058 = vmax.f32 %v1016, 0.0
        %v1059 = vmax.f32 %v1021, 0.0
        %v1060 = vmax.f32 %v1026, 0.0
        %v1061 = vmax.f32 %v1031, 0.0
        %v1062 = vmax.f32 %v1036, 0.0
        %v1063 = vmax.f32 %v1041, 0.0
        %v1064 = vmax.f32 %v1046, 0.0
        %1065 = vst [vmem:[%s340] sm:$0xff] %v1049
        %1066 = vst [vmem:[%s340 + $0x8] sm:$0xff] %v1050
        %1067 = vst [vmem:[%s340 + $0x10] sm:$0xff] %v1051
        %1068 = vst [vmem:[%s340 + $0x18] sm:$0xff] %v1052
        %1069 = vst [vmem:[%s340 + $0x20] sm:$0xff] %v1053
        %1070 = vst [vmem:[%s340 + $0x28] sm:$0xff] %v1054
        %1071 = vst [vmem:[%s340 + $0x30] sm:$0xff] %v1055
        %1072 = vst [vmem:[%s340 + $0x38] sm:$0xff] %v1056
        %1073 = vst [vmem:[%s340 + $0x40] sm:$0xff] %v1057
        %1074 = vst [vmem:[%s340 + $0x48] sm:$0xff] %v1058
        %1075 = vst [vmem:[%s340 + $0x50] sm:$0xff] %v1059
        %1076 = vst [vmem:[%s340 + $0x58] sm:$0xff] %v1060
        %1077 = vst [vmem:[%s340 + $0x60] sm:$0xff] %v1061
        %1078 = vst [vmem:[%s340 + $0x68] sm:$0xff] %v1062
        %1079 = vst [vmem:[%s340 + $0x70] sm:$0xff] %v1063
        %1080 = vst [vmem:[%s340 + $0x78] sm:$0xff] %v1064
        %s1081 = sand.u32 %s186, 1
        %s1082 = scalar_lea.sflag [#allocation4], %s1081
        %s1083 = sand.u32 %s186, 1
        %s1084 = smul.addr %s1083, 128
        %s1085 = scalar_lea.vmem [#allocation10], %s1084
        // Predicated region
        $region65: #{tpu_custom_call.1} parent=47 // pred_check
          %p1086 = pneg %p196
        $region66: #{tpu_custom_call.1} parent=47 // pred_check_branch
          %1088 = sbr.rel (%p1086) target = $region68
        $region67: #{tpu_custom_call.1} parent=47 // pred_region
          %s1089 = smul.u32 16, %s26
          %s1091 = ssub.s32 2048, 2048
          %1092 = vsyncadd %s1082, %s1091
          %s1093 = smul.addr %s1089, 128
          %s1094 = scalar_lea.hbm %s7, %s1093
          %s1095 = sshll.u32 %s1085, 4
          %s1096 = int_to_ptr.vmem [resolvable:$true] %s1095
          %1101 = dma.vmem_to_hbm [thread:$0]  %s1096, 2048, %s1094, %s1082, 128, 128, 8
        $region68: #{tpu_custom_call.1} parent=47 // pred_fallthru
          _
      $region48: #{tpu_custom_call.1} parent=5 // pred_fallthru
        _
      %p1102 = scmp.le.s32.totalorder 2, %s21
      // Predicated region
      $region69: #{tpu_custom_call.1} parent=5 // pred_check
        %p1103 = pneg %p1102
      $region70: #{tpu_custom_call.1} parent=5 // pred_check_branch
        %1105 = sbr.rel (%p1103) target = $region72
      $region71: #{tpu_custom_call.1} parent=5 // pred_region
        %s1106 = ssub.s32 %s21, 2
        // Predicated region
        $region73: #{tpu_custom_call.1} parent=71 // pred_check
          %p1107 = pneg %p202
        $region74: #{tpu_custom_call.1} parent=71 // pred_check_branch
          %1109 = sbr.rel (%p1107) target = $region76
        $region75: #{tpu_custom_call.1} parent=71 // pred_region
          %s1110 = sand.u32 %s187, 1
          %s1111 = scalar_lea.sflag [#allocation4], %s1110
          %s1112 = sand.u32 %s187, 1
          %s1113 = smul.addr %s1112, 128
          %s1114 = scalar_lea.vmem [#allocation10], %s1113
          %1115 = dma.done %s1111, 2048
        $region76: #{tpu_custom_call.1} parent=71 // pred_fallthru
          _
      $region72: #{tpu_custom_call.1} parent=5 // pred_fallthru
        _
    $region6: #{tpu_custom_call.1} parent=1 // loop_footer
      %s25 = sadd.s32 1, %s21
    $region7: #{tpu_custom_call.1} parent=1 // loop_footer_branch
      %20 = sbr.rel target = $region3
    $region8: #{tpu_custom_call.1} parent=1 // loop_exit
      _
    %1116 = vsyncpa [#allocation3], 1
    %s1117 = scalar_lea.sflag [#allocation3], 1
    %1118 = vsyncpa %s1117, 1
    %1119 = vsyncpa [#allocation6], 1
    %1120 = vsyncpa [#allocation9], 1
    %1121 = vsyncpa [#allocation4], 1
    %s1122 = scalar_lea.sflag [#allocation4], 1
    %1123 = vsyncpa %s1122, 1

</llo_original>
